<compile_context>
chip_gen: v5e
topology: v5e:2x2
jax: 0.10.0
libtpu: 0.0.40
codegen_flags: <defaults>
</compile_context>

<pallas_src>
import functools

import jax
import jax.numpy as jnp
from jax.experimental import pallas as pl
from jax.experimental.pallas import tpu as pltpu


def _round_up(x, m):
    return ((x + m - 1) // m) * m


def _critic_kernel(s_ref, a_ref,
                   w14s_ref, w14a_ref, b14_ref,
                   w2_ref, b2_ref, w5_ref, b5_ref,
                   w3_ref, w6_ref, b36_ref,
                   out_ref):
    H = w2_ref.shape[0]            # hidden width (256)
    wdt = w14s_ref.dtype           # matmul operand dtype (f32 or bf16)

    s = s_ref[...].astype(wdt)
    a = a_ref[...].astype(wdt)

    # ----- fused layer 1 for both heads: relu([s,a] @ [w1||w4] + [b1||b4]) ---
    # (concat-free: weight rows pre-split into state / action parts)
    hg = (jnp.dot(s, w14s_ref[...], preferred_element_type=jnp.float32)
          + jnp.dot(a, w14a_ref[...], preferred_element_type=jnp.float32)
          + b14_ref[...])
    hg = jnp.maximum(hg, 0.0)

    h = hg[:, :H].astype(wdt)      # Q1 head hidden (lane slice at 128-mult)
    g = hg[:, H:].astype(wdt)      # Q2 head hidden

    # ----- layer 2 (per head, distinct activations) --------------------------
    h2 = jnp.maximum(
        jnp.dot(h, w2_ref[...], preferred_element_type=jnp.float32) + b2_ref[...], 0.0)
    g2 = jnp.maximum(
        jnp.dot(g, w5_ref[...], preferred_element_type=jnp.float32) + b5_ref[...], 0.0)

    # ----- layer 3: scalar heads into one (TB, 2) output buffer --------------
    b36 = b36_ref[...]
    q1 = jnp.dot(h2.astype(wdt), w3_ref[...], preferred_element_type=jnp.float32)
    q2 = jnp.dot(g2.astype(wdt), w6_ref[...], preferred_element_type=jnp.float32)
    out_ref[:, 0:1] = (q1 + b36[:, 0:1]).astype(out_ref.dtype)
    out_ref[:, 1:2] = (q2 + b36[:, 1:2]).astype(out_ref.dtype)


@functools.partial(jax.jit, static_argnames=("block_b",))
def critic_forward(state, action, packed, *, block_b=1024):
    """Pallas implementation of Critic.forward -> (q1, q2)."""
    B, S = state.shape
    A = action.shape[1]
    H = packed["w2"].shape[0]

    block_b = _round_up(max(block_b, 8), 8)
    TB = min(block_b, _round_up(B, 8))          # batch tile (multiple of 8)
    Bp = _round_up(B, TB)                       # padded batch
    if Bp != B:
        state = jnp.pad(state, ((0, Bp - B), (0, 0)))
        action = jnp.pad(action, ((0, Bp - B), (0, 0)))
    grid = (Bp // TB,)

    weights = (packed["w14_s"], packed["w14_a"], packed["b14"],
               packed["w2"], packed["b2"], packed["w5"], packed["b5"],
               packed["w3"], packed["w6"], packed["b36"])

    def _resident(x):
        shape = x.shape
        return pl.BlockSpec(shape, lambda *_: (0,) * len(shape))

    in_specs = ([pl.BlockSpec((TB, S), lambda i: (i, 0)),
                 pl.BlockSpec((TB, A), lambda i: (i, 0))]
                + [_resident(w) for w in weights])

    weight_bytes = sum(int(w.size) * w.dtype.itemsize for w in weights)
    io_bytes = ((int(state.size) + int(action.size)) * state.dtype.itemsize
                + Bp * 2 * 4)
    flops = 2 * Bp * ((S + A) * 2 * H + 2 * H * H + 2 * H)

    q12 = pl.pallas_call(
        _critic_kernel,
        out_shape=jax.ShapeDtypeStruct((Bp, 2), jnp.float32),
        grid=grid,
        in_specs=in_specs,
        out_specs=pl.BlockSpec((TB, 2), lambda i: (i, 0)),
        compiler_params=pltpu.CompilerParams(
            dimension_semantics=("parallel",)),
        cost_estimate=pl.CostEstimate(
            flops=flops, transcendentals=0,
            bytes_accessed=weight_bytes + io_bytes),
    )(state, action, *weights)

    q12 = q12[:B]
    return q12[:, 0:1], q12[:, 1:2]


def pack_critic_params(params, state_dim, weight_dtype=jnp.float32):
    """Fuse/split nn.Linear-style params into the kernel's layout.

    weight_dtype=jnp.bfloat16 halves weight DMA bytes on v6e/v7x (relax the
    correctness tolerance if you do that); biases stay f32.
    """
    w14 = jnp.concatenate([params["w1"], params["w4"]], axis=1)   # [in, 2H]
    return {
        "w14_s": w14[:state_dim].astype(weight_dtype),            # [S,  2H]
        "w14_a": w14[state_dim:].astype(weight_dtype),            # [A,  2H]
        "b14": jnp.concatenate([params["b1"], params["b4"]],
                               axis=1).astype(jnp.float32),       # [1,  2H]
        "w2": params["w2"].astype(weight_dtype),                  # [H,  H]
        "b2": params["b2"].astype(jnp.float32),                   # [1,  H]
        "w5": params["w5"].astype(weight_dtype),                  # [H,  H]
        "b5": params["b5"].astype(jnp.float32),                   # [1,  H]
        "w3": params["w3"].astype(weight_dtype),                  # [H,  1]
        "w6": params["w6"].astype(weight_dtype),                  # [H,  1]
        "b36": jnp.concatenate([params["b3"], params["b6"]],
                               axis=1).astype(jnp.float32),       # [1,  2]
    }


def init_critic_params(key, state_dim, action_dim, hidden=256):
    """Deterministic init matching nn.Linear shapes (weights stored [in, out])."""
    in_dim = state_dim + action_dim
    dims = [(in_dim, hidden), (hidden, hidden), (hidden, 1),
            (in_dim, hidden), (hidden, hidden), (hidden, 1)]
    params = {}
    keys = jax.random.split(key, 2 * len(dims))
    for i, (fan_in, fan_out) in enumerate(dims):
        bound = 1.0 / jnp.sqrt(fan_in)
        params[f"w{i+1}"] = jax.random.uniform(
            keys[2 * i], (fan_in, fan_out), jnp.float32, -bound, bound)
        params[f"b{i+1}"] = jax.random.uniform(
            keys[2 * i + 1], (1, fan_out), jnp.float32, -bound, bound)
    return params


def critic_forward_ref(state, action, params):
    """Plain-JAX reference for correctness checking."""
    sa = jnp.concatenate([state, action], axis=1)
    h = jnp.maximum(sa @ params["w1"] + params["b1"], 0.0)
    h = jnp.maximum(h @ params["w2"] + params["b2"], 0.0)
    q1 = h @ params["w3"] + params["b3"]
    g = jnp.maximum(sa @ params["w4"] + params["b4"], 0.0)
    g = jnp.maximum(g @ params["w5"] + params["b5"], 0.0)
    q2 = g @ params["w6"] + params["b6"]
    return q1, q2


if __name__ == "__main__":
    key = jax.random.PRNGKey(0)
    k_param, k_state, k_action = jax.random.split(key, 3)

    batch, state_dim, action_dim = 8, 12, 4
    params = init_critic_params(k_param, state_dim, action_dim)
    packed = pack_critic_params(params, state_dim)   # f32 for the 1e-5 check

    state = jax.random.normal(k_state, (batch, state_dim), jnp.float32)
    action = jax.random.normal(k_action, (batch, action_dim), jnp.float32)

    q1, q2 = critic_forward(state, action, packed)
    jax.block_until_ready((q1, q2))

    q1_ref, q2_ref = critic_forward_ref(state, action, params)
    assert q1.shape == (batch, 1) and q2.shape == (batch, 1)
    assert jnp.allclose(q1, q1_ref, atol=1e-5, rtol=1e-5)
    assert jnp.allclose(q2, q2_ref, atol=1e-5, rtol=1e-5)

    # Exercise the multi-block grid + ragged-batch padding path.
    batch2 = 300
    k_s2, k_a2 = jax.random.split(jax.random.PRNGKey(1))
    state2 = jax.random.normal(k_s2, (batch2, state_dim), jnp.float32)
    action2 = jax.random.normal(k_a2, (batch2, action_dim), jnp.float32)
    q1b, q2b = critic_forward(state2, action2, packed, block_b=128)
    jax.block_until_ready((q1b, q2b))
    q1b_ref, q2b_ref = critic_forward_ref(state2, action2, params)
    assert jnp.allclose(q1b, q1b_ref, atol=1e-5, rtol=1e-5)
    assert jnp.allclose(q2b, q2b_ref, atol=1e-5, rtol=1e-5)

    print("KERNEL_OK")
</pallas_src>

<mosaic_0001>
module attributes {stable_mosaic.version = 11 : i64} {
  func.func @_critic_kernel(%arg0: i32, %arg1: memref<8x12xf32, #tpu.memory_space<vmem>>, %arg2: memref<8x4xf32, #tpu.memory_space<vmem>>, %arg3: memref<12x512xf32, #tpu.memory_space<vmem>>, %arg4: memref<4x512xf32, #tpu.memory_space<vmem>>, %arg5: memref<1x512xf32, #tpu.memory_space<vmem>>, %arg6: memref<256x256xf32, #tpu.memory_space<vmem>>, %arg7: memref<1x256xf32, #tpu.memory_space<vmem>>, %arg8: memref<256x256xf32, #tpu.memory_space<vmem>>, %arg9: memref<1x256xf32, #tpu.memory_space<vmem>>, %arg10: memref<256x1xf32, #tpu.memory_space<vmem>>, %arg11: memref<256x1xf32, #tpu.memory_space<vmem>>, %arg12: memref<1x2xf32, #tpu.memory_space<vmem>>, %arg13: memref<8x2xf32, #tpu.memory_space<vmem>>) attributes {dimension_semantics = [#tpu.dimension_semantics<parallel>], iteration_bounds = array<i64: 1>, scalar_prefetch = 0 : i64, scratch_operands = 0 : i64, tpu.core_type = #tpu.core_type<tc>, window_params = [{transform_indices = @transform_0, window_bounds = array<i64: 8, 12>}, {transform_indices = @transform_1, window_bounds = array<i64: 8, 4>}, {pipeline_mode = #tpu.pipeline_mode<synchronous>, transform_indices = @transform_2, window_bounds = array<i64: 12, 512>}, {pipeline_mode = #tpu.pipeline_mode<synchronous>, transform_indices = @transform_3, window_bounds = array<i64: 4, 512>}, {pipeline_mode = #tpu.pipeline_mode<synchronous>, transform_indices = @transform_4, window_bounds = array<i64: 1, 512>}, {pipeline_mode = #tpu.pipeline_mode<synchronous>, transform_indices = @transform_5, window_bounds = array<i64: 256, 256>}, {pipeline_mode = #tpu.pipeline_mode<synchronous>, transform_indices = @transform_6, window_bounds = array<i64: 1, 256>}, {pipeline_mode = #tpu.pipeline_mode<synchronous>, transform_indices = @transform_7, window_bounds = array<i64: 256, 256>}, {pipeline_mode = #tpu.pipeline_mode<synchronous>, transform_indices = @transform_8, window_bounds = array<i64: 1, 256>}, {pipeline_mode = #tpu.pipeline_mode<synchronous>, transform_indices = @transform_9, window_bounds = array<i64: 256, 1>}, {pipeline_mode = #tpu.pipeline_mode<synchronous>, transform_indices = @transform_10, window_bounds = array<i64: 256, 1>}, {pipeline_mode = #tpu.pipeline_mode<synchronous>, transform_indices = @transform_11, window_bounds = array<i64: 1, 2>}, {transform_indices = @transform_12, window_bounds = array<i64: 8, 2>}]} {
    %c0 = arith.constant 0 : index
    %c0_0 = arith.constant 0 : index
    %0 = vector.load %arg1[%c0, %c0_0] : memref<8x12xf32, #tpu.memory_space<vmem>>, vector<8x12xf32>
    %c0_1 = arith.constant 0 : index
    %c0_2 = arith.constant 0 : index
    %1 = vector.load %arg2[%c0_1, %c0_2] : memref<8x4xf32, #tpu.memory_space<vmem>>, vector<8x4xf32>
    %c0_3 = arith.constant 0 : index
    %c0_4 = arith.constant 0 : index
    %2 = vector.load %arg3[%c0_3, %c0_4] : memref<12x512xf32, #tpu.memory_space<vmem>>, vector<12x512xf32>
    %cst = arith.constant dense<0.000000e+00> : vector<8x512xf32>
    %3 = tpu.matmul %0, %2, %cst {dimension_numbers = #tpu.dot_dimension_numbers<[1], [0], [0], [1], [0, 0, 1, 1], [], []>} : vector<8x12xf32>, vector<12x512xf32>, vector<8x512xf32> -> vector<8x512xf32>
    %c0_5 = arith.constant 0 : index
    %c0_6 = arith.constant 0 : index
    %4 = vector.load %arg4[%c0_5, %c0_6] : memref<4x512xf32, #tpu.memory_space<vmem>>, vector<4x512xf32>
    %cst_7 = arith.constant dense<0.000000e+00> : vector<8x512xf32>
    %5 = tpu.matmul %1, %4, %cst_7 {dimension_numbers = #tpu.dot_dimension_numbers<[1], [0], [0], [1], [0, 0, 1, 1], [], []>} : vector<8x4xf32>, vector<4x512xf32>, vector<8x512xf32> -> vector<8x512xf32>
    %6 = arith.addf %3, %5 : vector<8x512xf32>
    %c0_8 = arith.constant 0 : index
    %c0_9 = arith.constant 0 : index
    %7 = vector.load %arg5[%c0_8, %c0_9] : memref<1x512xf32, #tpu.memory_space<vmem>>, vector<1x512xf32>
    %8 = vector.broadcast %7 : vector<1x512xf32> to vector<8x512xf32>
    %9 = arith.addf %6, %8 : vector<8x512xf32>
    %cst_10 = arith.constant 0.000000e+00 : f32
    %10 = vector.broadcast %cst_10 : f32 to vector<8x512xf32>
    %11 = arith.maximumf %9, %10 : vector<8x512xf32>
    %12 = vector.extract_strided_slice %11 {offsets = [0, 0], sizes = [8, 256], strides = [1, 1]} : vector<8x512xf32> to vector<8x256xf32>
    %13 = vector.extract_strided_slice %11 {offsets = [0, 256], sizes = [8, 256], strides = [1, 1]} : vector<8x512xf32> to vector<8x256xf32>
    %c0_11 = arith.constant 0 : index
    %c0_12 = arith.constant 0 : index
    %14 = vector.load %arg6[%c0_11, %c0_12] : memref<256x256xf32, #tpu.memory_space<vmem>>, vector<256x256xf32>
    %cst_13 = arith.constant dense<0.000000e+00> : vector<8x256xf32>
    %15 = tpu.matmul %12, %14, %cst_13 {dimension_numbers = #tpu.dot_dimension_numbers<[1], [0], [0], [1], [0, 0, 1, 1], [], []>} : vector<8x256xf32>, vector<256x256xf32>, vector<8x256xf32> -> vector<8x256xf32>
    %c0_14 = arith.constant 0 : index
    %c0_15 = arith.constant 0 : index
    %16 = vector.load %arg7[%c0_14, %c0_15] : memref<1x256xf32, #tpu.memory_space<vmem>>, vector<1x256xf32>
    %17 = vector.broadcast %16 : vector<1x256xf32> to vector<8x256xf32>
    %18 = arith.addf %15, %17 : vector<8x256xf32>
    %cst_16 = arith.constant 0.000000e+00 : f32
    %19 = vector.broadcast %cst_16 : f32 to vector<8x256xf32>
    %20 = arith.maximumf %18, %19 : vector<8x256xf32>
    %c0_17 = arith.constant 0 : index
    %c0_18 = arith.constant 0 : index
    %21 = vector.load %arg8[%c0_17, %c0_18] : memref<256x256xf32, #tpu.memory_space<vmem>>, vector<256x256xf32>
    %cst_19 = arith.constant dense<0.000000e+00> : vector<8x256xf32>
    %22 = tpu.matmul %13, %21, %cst_19 {dimension_numbers = #tpu.dot_dimension_numbers<[1], [0], [0], [1], [0, 0, 1, 1], [], []>} : vector<8x256xf32>, vector<256x256xf32>, vector<8x256xf32> -> vector<8x256xf32>
    %c0_20 = arith.constant 0 : index
    %c0_21 = arith.constant 0 : index
    %23 = vector.load %arg9[%c0_20, %c0_21] : memref<1x256xf32, #tpu.memory_space<vmem>>, vector<1x256xf32>
    %24 = vector.broadcast %23 : vector<1x256xf32> to vector<8x256xf32>
    %25 = arith.addf %22, %24 : vector<8x256xf32>
    %cst_22 = arith.constant 0.000000e+00 : f32
    %26 = vector.broadcast %cst_22 : f32 to vector<8x256xf32>
    %27 = arith.maximumf %25, %26 : vector<8x256xf32>
    %c0_23 = arith.constant 0 : index
    %c0_24 = arith.constant 0 : index
    %28 = vector.load %arg12[%c0_23, %c0_24] : memref<1x2xf32, #tpu.memory_space<vmem>>, vector<1x2xf32>
    %c0_25 = arith.constant 0 : index
    %c0_26 = arith.constant 0 : index
    %29 = vector.load %arg10[%c0_25, %c0_26] : memref<256x1xf32, #tpu.memory_space<vmem>>, vector<256x1xf32>
    %cst_27 = arith.constant dense<0.000000e+00> : vector<8x1xf32>
    %30 = tpu.matmul %20, %29, %cst_27 {dimension_numbers = #tpu.dot_dimension_numbers<[1], [0], [0], [1], [0, 0, 1, 1], [], []>} : vector<8x256xf32>, vector<256x1xf32>, vector<8x1xf32> -> vector<8x1xf32>
    %c0_28 = arith.constant 0 : index
    %c0_29 = arith.constant 0 : index
    %31 = vector.load %arg11[%c0_28, %c0_29] : memref<256x1xf32, #tpu.memory_space<vmem>>, vector<256x1xf32>
    %cst_30 = arith.constant dense<0.000000e+00> : vector<8x1xf32>
    %32 = tpu.matmul %27, %31, %cst_30 {dimension_numbers = #tpu.dot_dimension_numbers<[1], [0], [0], [1], [0, 0, 1, 1], [], []>} : vector<8x256xf32>, vector<256x1xf32>, vector<8x1xf32> -> vector<8x1xf32>
    %33 = vector.extract_strided_slice %28 {offsets = [0, 0], sizes = [1, 1], strides = [1, 1]} : vector<1x2xf32> to vector<1x1xf32>
    %34 = vector.broadcast %33 : vector<1x1xf32> to vector<8x1xf32>
    %35 = arith.addf %30, %34 : vector<8x1xf32>
    %c0_31 = arith.constant 0 : index
    %c0_32 = arith.constant 0 : index
    %36 = vector.load %arg13[%c0_31, %c0_32] : memref<8x2xf32, #tpu.memory_space<vmem>>, vector<8x1xf32>
    tpu.vector_store %arg13[%c0_31, %c0_32], %35 {strides = array<i32>} : memref<8x2xf32, #tpu.memory_space<vmem>>, vector<8x1xf32>,
    %37 = vector.extract_strided_slice %28 {offsets = [0, 1], sizes = [1, 1], strides = [1, 1]} : vector<1x2xf32> to vector<1x1xf32>
    %38 = vector.broadcast %37 : vector<1x1xf32> to vector<8x1xf32>
    %39 = arith.addf %32, %38 : vector<8x1xf32>
    %c0_33 = arith.constant 0 : index
    %c1 = arith.constant 1 : index
    %40 = vector.load %arg13[%c0_33, %c1] : memref<8x2xf32, #tpu.memory_space<vmem>>, vector<8x1xf32>
    tpu.vector_store %arg13[%c0_33, %c1], %39 {strides = array<i32>} : memref<8x2xf32, #tpu.memory_space<vmem>>, vector<8x1xf32>,
    return
  }
  func.func @transform_0(%arg0: i32) -> (i32, i32) {
    %c0_i32 = arith.constant 0 : i32
    %c0_i32_0 = arith.constant 0 : i32
    return %arg0, %c0_i32 : i32, i32
  }
  func.func @transform_1(%arg0: i32) -> (i32, i32) {
    %c0_i32 = arith.constant 0 : i32
    %c0_i32_0 = arith.constant 0 : i32
    return %arg0, %c0_i32 : i32, i32
  }
  func.func @transform_2(%arg0: i32) -> (i32, i32) {
    %c0_i32 = arith.constant 0 : i32
    %c0_i32_0 = arith.constant 0 : i32
    %c0_i32_1 = arith.constant 0 : i32
    return %c0_i32, %c0_i32_0 : i32, i32
  }
  func.func @transform_3(%arg0: i32) -> (i32, i32) {
    %c0_i32 = arith.constant 0 : i32
    %c0_i32_0 = arith.constant 0 : i32
    %c0_i32_1 = arith.constant 0 : i32
    return %c0_i32, %c0_i32_0 : i32, i32
  }
  func.func @transform_4(%arg0: i32) -> (i32, i32) {
    %c0_i32 = arith.constant 0 : i32
    %c0_i32_0 = arith.constant 0 : i32
    %c0_i32_1 = arith.constant 0 : i32
    return %c0_i32, %c0_i32_0 : i32, i32
  }
  func.func @transform_5(%arg0: i32) -> (i32, i32) {
    %c0_i32 = arith.constant 0 : i32
    %c0_i32_0 = arith.constant 0 : i32
    %c0_i32_1 = arith.constant 0 : i32
    return %c0_i32, %c0_i32_0 : i32, i32
  }
  func.func @transform_6(%arg0: i32) -> (i32, i32) {
    %c0_i32 = arith.constant 0 : i32
    %c0_i32_0 = arith.constant 0 : i32
    %c0_i32_1 = arith.constant 0 : i32
    return %c0_i32, %c0_i32_0 : i32, i32
  }
  func.func @transform_7(%arg0: i32) -> (i32, i32) {
    %c0_i32 = arith.constant 0 : i32
    %c0_i32_0 = arith.constant 0 : i32
    %c0_i32_1 = arith.constant 0 : i32
    return %c0_i32, %c0_i32_0 : i32, i32
  }
  func.func @transform_8(%arg0: i32) -> (i32, i32) {
    %c0_i32 = arith.constant 0 : i32
    %c0_i32_0 = arith.constant 0 : i32
    %c0_i32_1 = arith.constant 0 : i32
    return %c0_i32, %c0_i32_0 : i32, i32
  }
  func.func @transform_9(%arg0: i32) -> (i32, i32) {
    %c0_i32 = arith.constant 0 : i32
    %c0_i32_0 = arith.constant 0 : i32
    %c0_i32_1 = arith.constant 0 : i32
    return %c0_i32, %c0_i32_0 : i32, i32
  }
  func.func @transform_10(%arg0: i32) -> (i32, i32) {
    %c0_i32 = arith.constant 0 : i32
    %c0_i32_0 = arith.constant 0 : i32
    %c0_i32_1 = arith.constant 0 : i32
    return %c0_i32, %c0_i32_0 : i32, i32
  }
  func.func @transform_11(%arg0: i32) -> (i32, i32) {
    %c0_i32 = arith.constant 0 : i32
    %c0_i32_0 = arith.constant 0 : i32
    %c0_i32_1 = arith.constant 0 : i32
    return %c0_i32, %c0_i32_0 : i32, i32
  }
  func.func @transform_12(%arg0: i32) -> (i32, i32) {
    %c0_i32 = arith.constant 0 : i32
    %c0_i32_0 = arith.constant 0 : i32
    return %arg0, %c0_i32 : i32, i32
  }
}

</mosaic_0001>

<llo_original>
// kernel: critic_forward.1
$region0: #{critic_forward.1}
  #allocation0 [shape = 'u32[]', space=smem, size = 0x4, offset = 0x4, fixed_abs, tag = 'smem constant byte address 0x4 - core index']
  #allocation1 [shape = 'u32[72,128]{1,0:T(1,128)}', space=vmem, size = 0x9000, scoped, tag = 'internal scratch']
  %s0 = inlined_call_operand.hbm [shape: f32[8,12], index: 0, kind: input, shape index: {}]
  %s1 = inlined_call_operand.vmem [shape: f32[8,4], index: 1, kind: input, shape index: {}]
  %s2 = inlined_call_operand.hbm [shape: f32[12,512], index: 2, kind: input, shape index: {}]
  %s3 = inlined_call_operand.vmem [shape: f32[4,512], index: 3, kind: input, shape index: {}]
  %s4 = inlined_call_operand.vmem [shape: f32[1,512], index: 4, kind: input, shape index: {}]
  %s5 = inlined_call_operand.vmem [shape: f32[256,256], index: 5, kind: input, shape index: {}]
  %s6 = inlined_call_operand.vmem [shape: f32[1,256], index: 6, kind: input, shape index: {}]
  %s7 = inlined_call_operand.hbm [shape: f32[256,256], index: 7, kind: input, shape index: {}]
  %s8 = inlined_call_operand.hbm [shape: f32[1,256], index: 8, kind: input, shape index: {}]
  %s9 = inlined_call_operand.vmem [shape: f32[256,1], index: 9, kind: input, shape index: {}]
  %s10 = inlined_call_operand.vmem [shape: f32[256,1], index: 10, kind: input, shape index: {}]
  %s11 = inlined_call_operand.hbm [shape: f32[1,2], index: 11, kind: input, shape index: {}]
  %s12 = inlined_call_operand.vmem [shape: f32[8,2], index: 12, kind: output, shape index: {}]
  %s13 = sld [smem:[#allocation0]]
  $region78: #{critic_forward.1} parent=0
    _
  %s15 = ssub.s32 1, %s13
  %s16 = scalar_select 0, %s15, %s13
  $region1: #{critic_forward.1} parent=0
    #allocation2 [shape = 'u8[4096]{0}', space=vmem, size = 0x1000, scoped, tag = 'input window, operand 0, single buffered']
    #allocation3 [shape = 's32[1]{0}', space=sflag, size = 0x4, scoped, tag = 'scoped memory for critic_forward.1']
    #allocation4 [shape = 'u8[32768]{0}', space=vmem, size = 0x8000, scoped, tag = 'input window, operand 2, single buffered']
    #allocation5 [shape = 's32[1]{0}', space=sflag, size = 0x4, scoped, tag = 'scoped memory for critic_forward.1']
    #allocation6 [shape = 'u8[262144]{0}', space=vmem, size = 0x40000, scoped, tag = 'input window, operand 7, single buffered']
    #allocation7 [shape = 'u8[1024]{0}', space=vmem, size = 0x400, scoped, tag = 'input window, operand 8, single buffered']
    #allocation8 [shape = 's32[1]{0}', space=sflag, size = 0x4, scoped, tag = 'scoped memory for critic_forward.1']
    #allocation9 [shape = 'u8[512]{0}', space=vmem, size = 0x400, scoped, tag = 'input window, operand 11, single buffered']
    %17 = vsyncpa [#allocation3], 0
    %18 = vsyncpa [#allocation5], 0
    %19 = vsyncpa [#allocation8], 0
    // Predicated region
    $region2: #{critic_forward.1} parent=1 // pred_check
      _
    $region3: #{critic_forward.1} parent=1 // pred_check_branch
      %21 = sbr.rel (0) target = $region5
    $region4: #{critic_forward.1} parent=1 // pred_region
      %23 = vsyncadd [#allocation3], 0
      %s25 = sshll.u32 %s0, 4
      %s26 = int_to_ptr.hbm [resolvable:$true] %s25
      %s27 = sshll.u32 [#allocation2], 4
      %s28 = int_to_ptr.vmem [resolvable:$true] %s27
      %30 = dma.hbm_to_vmem [thread:$0]  %s26, 128, %s28, [#allocation3]
    $region5: #{critic_forward.1} parent=1 // pred_fallthru
      _
    // Predicated region
    $region6: #{critic_forward.1} parent=1 // pred_check
      _
    $region7: #{critic_forward.1} parent=1 // pred_check_branch
      %32 = sbr.rel (0) target = $region9
    $region8: #{critic_forward.1} parent=1 // pred_region
      _
    $region9: #{critic_forward.1} parent=1 // pred_fallthru
      _
    // Predicated region
    $region10: #{critic_forward.1} parent=1 // pred_check
      _
    $region11: #{critic_forward.1} parent=1 // pred_check_branch
      %34 = sbr.rel (0) target = $region13
    $region12: #{critic_forward.1} parent=1 // pred_region
      %36 = vsyncadd [#allocation5], 0
      %s37 = sshll.u32 %s2, 4
      %s38 = int_to_ptr.hbm [resolvable:$true] %s37
      %s39 = sshll.u32 [#allocation4], 4
      %s40 = int_to_ptr.vmem [resolvable:$true] %s39
      %45 = dma.hbm_to_vmem [thread:$0]  %s38, 1024, %s40, [#allocation5], 512, 512, 32
    $region13: #{critic_forward.1} parent=1 // pred_fallthru
      _
    // Predicated region
    $region14: #{critic_forward.1} parent=1 // pred_check
      _
    $region15: #{critic_forward.1} parent=1 // pred_check_branch
      %47 = sbr.rel (0) target = $region17
    $region16: #{critic_forward.1} parent=1 // pred_region
      _
    $region17: #{critic_forward.1} parent=1 // pred_fallthru
      _
    // Predicated region
    $region18: #{critic_forward.1} parent=1 // pred_check
      _
    $region19: #{critic_forward.1} parent=1 // pred_check_branch
      %49 = sbr.rel (0) target = $region21
    $region20: #{critic_forward.1} parent=1 // pred_region
      _
    $region21: #{critic_forward.1} parent=1 // pred_fallthru
      _
    // Predicated region
    $region22: #{critic_forward.1} parent=1 // pred_check
      _
    $region23: #{critic_forward.1} parent=1 // pred_check_branch
      %51 = sbr.rel (0) target = $region25
    $region24: #{critic_forward.1} parent=1 // pred_region
      _
    $region25: #{critic_forward.1} parent=1 // pred_fallthru
      _
    // Predicated region
    $region26: #{critic_forward.1} parent=1 // pred_check
      _
    $region27: #{critic_forward.1} parent=1 // pred_check_branch
      %53 = sbr.rel (0) target = $region29
    $region28: #{critic_forward.1} parent=1 // pred_region
      _
    $region29: #{critic_forward.1} parent=1 // pred_fallthru
      _
    // Predicated region
    $region30: #{critic_forward.1} parent=1 // pred_check
      _
    $region31: #{critic_forward.1} parent=1 // pred_check_branch
      %55 = sbr.rel (0) target = $region33
    $region32: #{critic_forward.1} parent=1 // pred_region
      %57 = vsyncadd [#allocation5], 0
      %s58 = sshll.u32 %s7, 4
      %s59 = int_to_ptr.hbm [resolvable:$true] %s58
      %s60 = sshll.u32 [#allocation6], 4
      %s61 = int_to_ptr.vmem [resolvable:$true] %s60
      %66 = dma.hbm_to_vmem [thread:$0]  %s59, 8192, %s61, [#allocation5], 256, 256, 16
    $region33: #{critic_forward.1} parent=1 // pred_fallthru
      _
    // Predicated region
    $region34: #{critic_forward.1} parent=1 // pred_check
      _
    $region35: #{critic_forward.1} parent=1 // pred_check_branch
      %68 = sbr.rel (0) target = $region37
    $region36: #{critic_forward.1} parent=1 // pred_region
      %70 = vsyncadd [#allocation8], 0
      %s72 = sshll.u32 %s8, 4
      %s73 = int_to_ptr.hbm [resolvable:$true] %s72
      %s74 = sshll.u32 [#allocation7], 4
      %s75 = int_to_ptr.vmem [resolvable:$true] %s74
      %77 = dma.hbm_to_vmem [thread:$0]  %s73, 32, %s75, [#allocation8]
    $region37: #{critic_forward.1} parent=1 // pred_fallthru
      _
    // Predicated region
    $region38: #{critic_forward.1} parent=1 // pred_check
      _
    $region39: #{critic_forward.1} parent=1 // pred_check_branch
      %79 = sbr.rel (0) target = $region41
    $region40: #{critic_forward.1} parent=1 // pred_region
      _
    $region41: #{critic_forward.1} parent=1 // pred_fallthru
      _
    // Predicated region
    $region42: #{critic_forward.1} parent=1 // pred_check
      _
    $region43: #{critic_forward.1} parent=1 // pred_check_branch
      %81 = sbr.rel (0) target = $region45
    $region44: #{critic_forward.1} parent=1 // pred_region
      _
    $region45: #{critic_forward.1} parent=1 // pred_fallthru
      _
    // Predicated region
    $region46: #{critic_forward.1} parent=1 // pred_check
      _
    $region47: #{critic_forward.1} parent=1 // pred_check_branch
      %83 = sbr.rel (0) target = $region49
    $region48: #{critic_forward.1} parent=1 // pred_region
      %85 = vsyncadd [#allocation8], 0
      %s87 = sshll.u32 %s11, 4
      %s88 = int_to_ptr.hbm [resolvable:$true] %s87
      %s89 = sshll.u32 [#allocation9], 4
      %s90 = int_to_ptr.vmem [resolvable:$true] %s89
      %92 = dma.hbm_to_vmem [thread:$0]  %s88, 16, %s90, [#allocation8]
    $region49: #{critic_forward.1} parent=1 // pred_fallthru
      _
    // Predicated region
    $region50: #{critic_forward.1} parent=1 // pred_check
      _
    $region51: #{critic_forward.1} parent=1 // pred_check_branch
      %94 = sbr.rel (0) target = $region53
    $region52: #{critic_forward.1} parent=1 // pred_region
      %96 = dma.done [#allocation3], 128
    $region53: #{critic_forward.1} parent=1 // pred_fallthru
      _
    // Predicated region
    $region54: #{critic_forward.1} parent=1 // pred_check
      _
    $region55: #{critic_forward.1} parent=1 // pred_check_branch
      %98 = sbr.rel (0) target = $region57
    $region56: #{critic_forward.1} parent=1 // pred_region
      %100 = dma.done [#allocation5], 1024
    $region57: #{critic_forward.1} parent=1 // pred_fallthru
      _
    // Predicated region
    $region58: #{critic_forward.1} parent=1 // pred_check
      _
    $region59: #{critic_forward.1} parent=1 // pred_check_branch
      %102 = sbr.rel (0) target = $region61
    $region60: #{critic_forward.1} parent=1 // pred_region
      %104 = dma.done [#allocation5], 8192
    $region61: #{critic_forward.1} parent=1 // pred_fallthru
      _
    // Predicated region
    $region62: #{critic_forward.1} parent=1 // pred_check
      _
    $region63: #{critic_forward.1} parent=1 // pred_check_branch
      %106 = sbr.rel (0) target = $region65
    $region64: #{critic_forward.1} parent=1 // pred_region
      %108 = dma.done [#allocation8], 32
    $region65: #{critic_forward.1} parent=1 // pred_fallthru
      _
    // Predicated region
    $region66: #{critic_forward.1} parent=1 // pred_check
      _
    $region67: #{critic_forward.1} parent=1 // pred_check_branch
      %110 = sbr.rel (0) target = $region69
    $region68: #{critic_forward.1} parent=1 // pred_region
      %112 = dma.done [#allocation8], 16
    $region69: #{critic_forward.1} parent=1 // pred_fallthru
      _
    %v113 = vld [vmem:[#allocation2] sm:$0xff]
    %v114 = vld [vmem:[%s1] sm:$0xff]
    %v115 = vld [vmem:[#allocation4] sm:$0xff]
    %v116 = vld [vmem:[#allocation4 + $0x8] sm:$0xff]
    %v117 = vld [vmem:[#allocation4 + $0x10] sm:$0xff]
    %v118 = vld [vmem:[#allocation4 + $0x18] sm:$0xff]
    %v119 = vld [vmem:[#allocation4 + $0x20] sm:$0xf]
    %v120 = vld [vmem:[#allocation4 + $0x28] sm:$0xf]
    %v121 = vld [vmem:[#allocation4 + $0x30] sm:$0xf]
    %v122 = vld [vmem:[#allocation4 + $0x38] sm:$0xf]
    %v123 = vld [vmem:[%s3] sm:$0xff]
    %v124 = vld [vmem:[%s3 + $0x8] sm:$0xff]
    %127 = vst [vmem:[#allocation1] ss:$2 sm:$0xff] %v123
    %s128 = scalar_lea.vmem [#allocation1], 16
    %129 = vst [vmem:[%s128] ss:$2 sm:$0xff] %v124
    %v130 = vld.sshfl [vmem:[#allocation1] sm:$0xff pattern:$0x75316420]
    %v131 = vld.sshfl [vmem:[#allocation1 + $0x8] sm:$0xff pattern:$0x75316420]
    %v132 = vld.sshfl [vmem:[#allocation1 + $0x10] sm:$0xff pattern:$0x75316420]
    %v133 = vld.sshfl [vmem:[#allocation1 + $0x18] sm:$0xff pattern:$0x75316420]
    %vm134 = vcmask 31744
    %v136 = vsel %vm134, %v114, 0
    %vm138 = vcmask 1043456
    %v139 = vsel %vm138, %v130, 0
    %v141 = vsel %vm138, %v131, 0
    %v143 = vsel %vm138, %v132, 0
    %v145 = vsel %vm138, %v133, 0
    %147 = vmatpush.msra.mxu0 0.0
    %148 = vmatpush.msra.mxu0 0.0
    %149 = vmatpush.msra.mxu0 0.0
    %150 = vmatpush.msra.mxu0 0.0
    %151 = vmatpush.msra.mxu0 0.0
    %152 = vmatpush.msra.mxu0 0.0
    %153 = vmatpush.msra.mxu0 0.0
    %154 = vmatpush.msra.mxu0 0.0
    %155 = vmatpush.msra.mxu0 0.0
    %156 = vmatpush.msra.mxu0 0.0
    %157 = vmatpush.msra.mxu0 0.0
    %158 = vmatpush.msra.mxu0 0.0
    %159 = vmatpush.msra.mxu0 0.0
    %160 = vmatpush.msra.mxu0 0.0
    %161 = vmatpush.msra.mxu0 0.0
    %162 = vmatpush.msra.mxu0 %v139
    %163 = vmatmul.f32.gmra.mxu0 %v136
    %v164 = vpop.f32.mrf.mxu0
    %v165 = vadd.f32 0.0, %v164
    %166 = vdwg.mxu0
    %167 = vmatpush.msra.mxu0 0.0
    %168 = vmatpush.msra.mxu0 0.0
    %169 = vmatpush.msra.mxu0 0.0
    %170 = vmatpush.msra.mxu0 0.0
    %171 = vmatpush.msra.mxu0 0.0
    %172 = vmatpush.msra.mxu0 0.0
    %173 = vmatpush.msra.mxu0 0.0
    %174 = vmatpush.msra.mxu0 0.0
    %175 = vmatpush.msra.mxu0 0.0
    %176 = vmatpush.msra.mxu0 0.0
    %177 = vmatpush.msra.mxu0 0.0
    %178 = vmatpush.msra.mxu0 0.0
    %179 = vmatpush.msra.mxu0 0.0
    %180 = vmatpush.msra.mxu0 0.0
    %181 = vmatpush.msra.mxu0 0.0
    %182 = vmatpush.msra.mxu0 %v141
    %183 = vmatmul.f32.gmra.mxu0 %v136
    %v184 = vpop.f32.mrf.mxu0
    %v185 = vadd.f32 0.0, %v184
    %186 = vdwg.mxu0
    %187 = vmatpush.msra.mxu0 0.0
    %188 = vmatpush.msra.mxu0 0.0
    %189 = vmatpush.msra.mxu0 0.0
    %190 = vmatpush.msra.mxu0 0.0
    %191 = vmatpush.msra.mxu0 0.0
    %192 = vmatpush.msra.mxu0 0.0
    %193 = vmatpush.msra.mxu0 0.0
    %194 = vmatpush.msra.mxu0 0.0
    %195 = vmatpush.msra.mxu0 0.0
    %196 = vmatpush.msra.mxu0 0.0
    %197 = vmatpush.msra.mxu0 0.0
    %198 = vmatpush.msra.mxu0 0.0
    %199 = vmatpush.msra.mxu0 0.0
    %200 = vmatpush.msra.mxu0 0.0
    %201 = vmatpush.msra.mxu0 0.0
    %202 = vmatpush.msra.mxu0 %v143
    %203 = vmatmul.f32.gmra.mxu0 %v136
    %v204 = vpop.f32.mrf.mxu0
    %v205 = vadd.f32 0.0, %v204
    %206 = vdwg.mxu0
    %207 = vmatpush.msra.mxu0 0.0
    %208 = vmatpush.msra.mxu0 0.0
    %209 = vmatpush.msra.mxu0 0.0
    %210 = vmatpush.msra.mxu0 0.0
    %211 = vmatpush.msra.mxu0 0.0
    %212 = vmatpush.msra.mxu0 0.0
    %213 = vmatpush.msra.mxu0 0.0
    %214 = vmatpush.msra.mxu0 0.0
    %215 = vmatpush.msra.mxu0 0.0
    %216 = vmatpush.msra.mxu0 0.0
    %217 = vmatpush.msra.mxu0 0.0
    %218 = vmatpush.msra.mxu0 0.0
    %219 = vmatpush.msra.mxu0 0.0
    %220 = vmatpush.msra.mxu0 0.0
    %221 = vmatpush.msra.mxu0 0.0
    %222 = vmatpush.msra.mxu0 %v145
    %223 = vmatmul.f32.gmra.mxu0 %v136
    %v224 = vpop.f32.mrf.mxu0
    %v225 = vadd.f32 0.0, %v224
    %226 = vdwg.mxu0
    %vm227 = vcmask 97280
    %v229 = vsel %vm227, %v113, 0
    %v232 = vsel %vm138, %v119, 0
    %v235 = vsel %vm138, %v120, 0
    %v238 = vsel %vm138, %v121, 0
    %v241 = vsel %vm138, %v122, 0
    %243 = vmatpush.msra.mxu0 0.0
    %244 = vmatpush.msra.mxu0 0.0
    %245 = vmatpush.msra.mxu0 0.0
    %246 = vmatpush.msra.mxu0 0.0
    %247 = vmatpush.msra.mxu0 0.0
    %248 = vmatpush.msra.mxu0 0.0
    %249 = vmatpush.msra.mxu0 0.0
    %250 = vmatpush.msra.mxu0 0.0
    %251 = vmatpush.msra.mxu0 0.0
    %252 = vmatpush.msra.mxu0 0.0
    %253 = vmatpush.msra.mxu0 0.0
    %254 = vmatpush.msra.mxu0 0.0
    %255 = vmatpush.msra.mxu0 0.0
    %256 = vmatpush.msra.mxu0 0.0
    %257 = vmatpush.msra.mxu0 %v232
    %258 = vmatpush.msra.mxu0 %v115
    %259 = vmatmul.f32.gmra.mxu0 %v229
    %v260 = vpop.f32.mrf.mxu0
    %v261 = vadd.f32 %v165, %v260
    %262 = vdwg.mxu0
    %263 = vmatpush.msra.mxu0 0.0
    %264 = vmatpush.msra.mxu0 0.0
    %265 = vmatpush.msra.mxu0 0.0
    %266 = vmatpush.msra.mxu0 0.0
    %267 = vmatpush.msra.mxu0 0.0
    %268 = vmatpush.msra.mxu0 0.0
    %269 = vmatpush.msra.mxu0 0.0
    %270 = vmatpush.msra.mxu0 0.0
    %271 = vmatpush.msra.mxu0 0.0
    %272 = vmatpush.msra.mxu0 0.0
    %273 = vmatpush.msra.mxu0 0.0
    %274 = vmatpush.msra.mxu0 0.0
    %275 = vmatpush.msra.mxu0 0.0
    %276 = vmatpush.msra.mxu0 0.0
    %277 = vmatpush.msra.mxu0 %v235
    %278 = vmatpush.msra.mxu0 %v116
    %279 = vmatmul.f32.gmra.mxu0 %v229
    %v280 = vpop.f32.mrf.mxu0
    %v281 = vadd.f32 %v185, %v280
    %282 = vdwg.mxu0
    %283 = vmatpush.msra.mxu0 0.0
    %284 = vmatpush.msra.mxu0 0.0
    %285 = vmatpush.msra.mxu0 0.0
    %286 = vmatpush.msra.mxu0 0.0
    %287 = vmatpush.msra.mxu0 0.0
    %288 = vmatpush.msra.mxu0 0.0
    %289 = vmatpush.msra.mxu0 0.0
    %290 = vmatpush.msra.mxu0 0.0
    %291 = vmatpush.msra.mxu0 0.0
    %292 = vmatpush.msra.mxu0 0.0
    %293 = vmatpush.msra.mxu0 0.0
    %294 = vmatpush.msra.mxu0 0.0
    %295 = vmatpush.msra.mxu0 0.0
    %296 = vmatpush.msra.mxu0 0.0
    %297 = vmatpush.msra.mxu0 %v238
    %298 = vmatpush.msra.mxu0 %v117
    %299 = vmatmul.f32.gmra.mxu0 %v229
    %v300 = vpop.f32.mrf.mxu0
    %v301 = vadd.f32 %v205, %v300
    %302 = vdwg.mxu0
    %303 = vmatpush.msra.mxu0 0.0
    %304 = vmatpush.msra.mxu0 0.0
    %305 = vmatpush.msra.mxu0 0.0
    %306 = vmatpush.msra.mxu0 0.0
    %307 = vmatpush.msra.mxu0 0.0
    %308 = vmatpush.msra.mxu0 0.0
    %309 = vmatpush.msra.mxu0 0.0
    %310 = vmatpush.msra.mxu0 0.0
    %311 = vmatpush.msra.mxu0 0.0
    %312 = vmatpush.msra.mxu0 0.0
    %313 = vmatpush.msra.mxu0 0.0
    %314 = vmatpush.msra.mxu0 0.0
    %315 = vmatpush.msra.mxu0 0.0
    %316 = vmatpush.msra.mxu0 0.0
    %317 = vmatpush.msra.mxu0 %v241
    %318 = vmatpush.msra.mxu0 %v118
    %319 = vmatmul.f32.gmra.mxu0 %v229
    %v320 = vpop.f32.mrf.mxu0
    %v321 = vadd.f32 %v225, %v320
    %322 = vdwg.mxu0
    %v323 = vld [vmem:[%s4] sm:$0xf]
    %v325 = vperm.slane %v323, 0
    %v326 = vperm.slane %v323, 1
    %v327 = vperm.slane %v323, 2
    %v328 = vperm.slane %v323, 3
    %v333 = vadd.f32 %v261, %v325
    %v334 = vadd.f32 %v281, %v326
    %v335 = vadd.f32 %v301, %v327
    %v336 = vadd.f32 %v321, %v328
    %v337 = vmax.f32 %v333, 0.0
    %v338 = vmax.f32 %v334, 0.0
    %v339 = vmax.f32 %v335, 0.0
    %v340 = vmax.f32 %v336, 0.0
    %v341 = vld [vmem:[%s5] sm:$0xff]
    %v342 = vld [vmem:[%s5 + $0x8] sm:$0xff]
    %v343 = vld [vmem:[%s5 + $0x10] sm:$0xff]
    %v344 = vld [vmem:[%s5 + $0x18] sm:$0xff]
    %v345 = vld [vmem:[%s5 + $0x20] sm:$0xff]
    %v346 = vld [vmem:[%s5 + $0x28] sm:$0xff]
    %v347 = vld [vmem:[%s5 + $0x30] sm:$0xff]
    %v348 = vld [vmem:[%s5 + $0x38] sm:$0xff]
    %v349 = vld [vmem:[%s5 + $0x40] sm:$0xff]
    %v350 = vld [vmem:[%s5 + $0x48] sm:$0xff]
    %v351 = vld [vmem:[%s5 + $0x50] sm:$0xff]
    %v352 = vld [vmem:[%s5 + $0x58] sm:$0xff]
    %v353 = vld [vmem:[%s5 + $0x60] sm:$0xff]
    %v354 = vld [vmem:[%s5 + $0x68] sm:$0xff]
    %v355 = vld [vmem:[%s5 + $0x70] sm:$0xff]
    %v356 = vld [vmem:[%s5 + $0x78] sm:$0xff]
    %v357 = vld [vmem:[%s5 + $0x80] sm:$0xff]
    %v358 = vld [vmem:[%s5 + $0x88] sm:$0xff]
    %v359 = vld [vmem:[%s5 + $0x90] sm:$0xff]
    %v360 = vld [vmem:[%s5 + $0x98] sm:$0xff]
    %v361 = vld [vmem:[%s5 + $0xa0] sm:$0xff]
    %v362 = vld [vmem:[%s5 + $0xa8] sm:$0xff]
    %v363 = vld [vmem:[%s5 + $0xb0] sm:$0xff]
    %v364 = vld [vmem:[%s5 + $0xb8] sm:$0xff]
    %v365 = vld [vmem:[%s5 + $0xc0] sm:$0xff]
    %v366 = vld [vmem:[%s5 + $0xc8] sm:$0xff]
    %v367 = vld [vmem:[%s5 + $0xd0] sm:$0xff]
    %v368 = vld [vmem:[%s5 + $0xd8] sm:$0xff]
    %v369 = vld [vmem:[%s5 + $0xe0] sm:$0xff]
    %v370 = vld [vmem:[%s5 + $0xe8] sm:$0xff]
    %v371 = vld [vmem:[%s5 + $0xf0] sm:$0xff]
    %v372 = vld [vmem:[%s5 + $0xf8] sm:$0xff]
    %v373 = vld [vmem:[%s5 + $0x100] sm:$0xff]
    %v374 = vld [vmem:[%s5 + $0x108] sm:$0xff]
    %v375 = vld [vmem:[%s5 + $0x110] sm:$0xff]
    %v376 = vld [vmem:[%s5 + $0x118] sm:$0xff]
    %v377 = vld [vmem:[%s5 + $0x120] sm:$0xff]
    %v378 = vld [vmem:[%s5 + $0x128] sm:$0xff]
    %v379 = vld [vmem:[%s5 + $0x130] sm:$0xff]
    %v380 = vld [vmem:[%s5 + $0x138] sm:$0xff]
    %v381 = vld [vmem:[%s5 + $0x140] sm:$0xff]
    %v382 = vld [vmem:[%s5 + $0x148] sm:$0xff]
    %v383 = vld [vmem:[%s5 + $0x150] sm:$0xff]
    %v384 = vld [vmem:[%s5 + $0x158] sm:$0xff]
    %v385 = vld [vmem:[%s5 + $0x160] sm:$0xff]
    %v386 = vld [vmem:[%s5 + $0x168] sm:$0xff]
    %v387 = vld [vmem:[%s5 + $0x170] sm:$0xff]
    %v388 = vld [vmem:[%s5 + $0x178] sm:$0xff]
    %v389 = vld [vmem:[%s5 + $0x180] sm:$0xff]
    %v390 = vld [vmem:[%s5 + $0x188] sm:$0xff]
    %v391 = vld [vmem:[%s5 + $0x190] sm:$0xff]
    %v392 = vld [vmem:[%s5 + $0x198] sm:$0xff]
    %v393 = vld [vmem:[%s5 + $0x1a0] sm:$0xff]
    %v394 = vld [vmem:[%s5 + $0x1a8] sm:$0xff]
    %v395 = vld [vmem:[%s5 + $0x1b0] sm:$0xff]
    %v396 = vld [vmem:[%s5 + $0x1b8] sm:$0xff]
    %v397 = vld [vmem:[%s5 + $0x1c0] sm:$0xff]
    %v398 = vld [vmem:[%s5 + $0x1c8] sm:$0xff]
    %v399 = vld [vmem:[%s5 + $0x1d0] sm:$0xff]
    %v400 = vld [vmem:[%s5 + $0x1d8] sm:$0xff]
    %v401 = vld [vmem:[%s5 + $0x1e0] sm:$0xff]
    %v402 = vld [vmem:[%s5 + $0x1e8] sm:$0xff]
    %v403 = vld [vmem:[%s5 + $0x1f0] sm:$0xff]
    %v404 = vld [vmem:[%s5 + $0x1f8] sm:$0xff]
    %v405 = vld [vmem:[%s6] sm:$0x3]
    %v407 = vperm.slane %v405, 0
    %v408 = vperm.slane %v405, 1
    %411 = vmatpush.msra.mxu0 %v371
    %412 = vmatpush.msra.mxu0 %v369
    %413 = vmatpush.msra.mxu0 %v367
    %414 = vmatpush.msra.mxu0 %v365
    %415 = vmatpush.msra.mxu0 %v363
    %416 = vmatpush.msra.mxu0 %v361
    %417 = vmatpush.msra.mxu0 %v359
    %418 = vmatpush.msra.mxu0 %v357
    %419 = vmatpush.msra.mxu0 %v355
    %420 = vmatpush.msra.mxu0 %v353
    %421 = vmatpush.msra.mxu0 %v351
    %422 = vmatpush.msra.mxu0 %v349
    %423 = vmatpush.msra.mxu0 %v347
    %424 = vmatpush.msra.mxu0 %v345
    %425 = vmatpush.msra.mxu0 %v343
    %426 = vmatpush.msra.mxu0 %v341
    %427 = vmatmul.f32.gmra.mxu0 %v337
    %v428 = vpop.f32.mrf.mxu0
    %v429 = vadd.f32 %v407, %v428
    %430 = vdwg.mxu0
    %431 = vmatpush.msra.mxu0 %v403
    %432 = vmatpush.msra.mxu0 %v401
    %433 = vmatpush.msra.mxu0 %v399
    %434 = vmatpush.msra.mxu0 %v397
    %435 = vmatpush.msra.mxu0 %v395
    %436 = vmatpush.msra.mxu0 %v393
    %437 = vmatpush.msra.mxu0 %v391
    %438 = vmatpush.msra.mxu0 %v389
    %439 = vmatpush.msra.mxu0 %v387
    %440 = vmatpush.msra.mxu0 %v385
    %441 = vmatpush.msra.mxu0 %v383
    %442 = vmatpush.msra.mxu0 %v381
    %443 = vmatpush.msra.mxu0 %v379
    %444 = vmatpush.msra.mxu0 %v377
    %445 = vmatpush.msra.mxu0 %v375
    %446 = vmatpush.msra.mxu0 %v373
    %447 = vmatmul.f32.gmra.mxu0 %v338
    %v448 = vpop.f32.mrf.mxu0
    %v449 = vadd.f32 %v429, %v448
    %450 = vdwg.mxu0
    %451 = vmatpush.msra.mxu0 %v372
    %452 = vmatpush.msra.mxu0 %v370
    %453 = vmatpush.msra.mxu0 %v368
    %454 = vmatpush.msra.mxu0 %v366
    %455 = vmatpush.msra.mxu0 %v364
    %456 = vmatpush.msra.mxu0 %v362
    %457 = vmatpush.msra.mxu0 %v360
    %458 = vmatpush.msra.mxu0 %v358
    %459 = vmatpush.msra.mxu0 %v356
    %460 = vmatpush.msra.mxu0 %v354
    %461 = vmatpush.msra.mxu0 %v352
    %462 = vmatpush.msra.mxu0 %v350
    %463 = vmatpush.msra.mxu0 %v348
    %464 = vmatpush.msra.mxu0 %v346
    %465 = vmatpush.msra.mxu0 %v344
    %466 = vmatpush.msra.mxu0 %v342
    %467 = vmatmul.f32.gmra.mxu0 %v337
    %v468 = vpop.f32.mrf.mxu0
    %v469 = vadd.f32 %v408, %v468
    %470 = vdwg.mxu0
    %471 = vmatpush.msra.mxu0 %v404
    %472 = vmatpush.msra.mxu0 %v402
    %473 = vmatpush.msra.mxu0 %v400
    %474 = vmatpush.msra.mxu0 %v398
    %475 = vmatpush.msra.mxu0 %v396
    %476 = vmatpush.msra.mxu0 %v394
    %477 = vmatpush.msra.mxu0 %v392
    %478 = vmatpush.msra.mxu0 %v390
    %479 = vmatpush.msra.mxu0 %v388
    %480 = vmatpush.msra.mxu0 %v386
    %481 = vmatpush.msra.mxu0 %v384
    %482 = vmatpush.msra.mxu0 %v382
    %483 = vmatpush.msra.mxu0 %v380
    %484 = vmatpush.msra.mxu0 %v378
    %485 = vmatpush.msra.mxu0 %v376
    %486 = vmatpush.msra.mxu0 %v374
    %487 = vmatmul.f32.gmra.mxu0 %v338
    %v488 = vpop.f32.mrf.mxu0
    %v489 = vadd.f32 %v469, %v488
    %490 = vdwg.mxu0
    %v491 = vmax.f32 %v449, 0.0
    %v492 = vmax.f32 %v489, 0.0
    %v493 = vld [vmem:[#allocation6] sm:$0xff]
    %v494 = vld [vmem:[#allocation6 + $0x8] sm:$0xff]
    %v495 = vld [vmem:[#allocation6 + $0x10] sm:$0xff]
    %v496 = vld [vmem:[#allocation6 + $0x18] sm:$0xff]
    %v497 = vld [vmem:[#allocation6 + $0x20] sm:$0xff]
    %v498 = vld [vmem:[#allocation6 + $0x28] sm:$0xff]
    %v499 = vld [vmem:[#allocation6 + $0x30] sm:$0xff]
    %v500 = vld [vmem:[#allocation6 + $0x38] sm:$0xff]
    %v501 = vld [vmem:[#allocation6 + $0x40] sm:$0xff]
    %v502 = vld [vmem:[#allocation6 + $0x48] sm:$0xff]
    %v503 = vld [vmem:[#allocation6 + $0x50] sm:$0xff]
    %v504 = vld [vmem:[#allocation6 + $0x58] sm:$0xff]
    %v505 = vld [vmem:[#allocation6 + $0x60] sm:$0xff]
    %v506 = vld [vmem:[#allocation6 + $0x68] sm:$0xff]
    %v507 = vld [vmem:[#allocation6 + $0x70] sm:$0xff]
    %v508 = vld [vmem:[#allocation6 + $0x78] sm:$0xff]
    %v509 = vld [vmem:[#allocation6 + $0x80] sm:$0xff]
    %v510 = vld [vmem:[#allocation6 + $0x88] sm:$0xff]
    %v511 = vld [vmem:[#allocation6 + $0x90] sm:$0xff]
    %v512 = vld [vmem:[#allocation6 + $0x98] sm:$0xff]
    %v513 = vld [vmem:[#allocation6 + $0xa0] sm:$0xff]
    %v514 = vld [vmem:[#allocation6 + $0xa8] sm:$0xff]
    %v515 = vld [vmem:[#allocation6 + $0xb0] sm:$0xff]
    %v516 = vld [vmem:[#allocation6 + $0xb8] sm:$0xff]
    %v517 = vld [vmem:[#allocation6 + $0xc0] sm:$0xff]
    %v518 = vld [vmem:[#allocation6 + $0xc8] sm:$0xff]
    %v519 = vld [vmem:[#allocation6 + $0xd0] sm:$0xff]
    %v520 = vld [vmem:[#allocation6 + $0xd8] sm:$0xff]
    %v521 = vld [vmem:[#allocation6 + $0xe0] sm:$0xff]
    %v522 = vld [vmem:[#allocation6 + $0xe8] sm:$0xff]
    %v523 = vld [vmem:[#allocation6 + $0xf0] sm:$0xff]
    %v524 = vld [vmem:[#allocation6 + $0xf8] sm:$0xff]
    %v525 = vld [vmem:[#allocation6 + $0x100] sm:$0xff]
    %v526 = vld [vmem:[#allocation6 + $0x108] sm:$0xff]
    %v527 = vld [vmem:[#allocation6 + $0x110] sm:$0xff]
    %v528 = vld [vmem:[#allocation6 + $0x118] sm:$0xff]
    %v529 = vld [vmem:[#allocation6 + $0x120] sm:$0xff]
    %v530 = vld [vmem:[#allocation6 + $0x128] sm:$0xff]
    %v531 = vld [vmem:[#allocation6 + $0x130] sm:$0xff]
    %v532 = vld [vmem:[#allocation6 + $0x138] sm:$0xff]
    %v533 = vld [vmem:[#allocation6 + $0x140] sm:$0xff]
    %v534 = vld [vmem:[#allocation6 + $0x148] sm:$0xff]
    %v535 = vld [vmem:[#allocation6 + $0x150] sm:$0xff]
    %v536 = vld [vmem:[#allocation6 + $0x158] sm:$0xff]
    %v537 = vld [vmem:[#allocation6 + $0x160] sm:$0xff]
    %v538 = vld [vmem:[#allocation6 + $0x168] sm:$0xff]
    %v539 = vld [vmem:[#allocation6 + $0x170] sm:$0xff]
    %v540 = vld [vmem:[#allocation6 + $0x178] sm:$0xff]
    %v541 = vld [vmem:[#allocation6 + $0x180] sm:$0xff]
    %v542 = vld [vmem:[#allocation6 + $0x188] sm:$0xff]
    %v543 = vld [vmem:[#allocation6 + $0x190] sm:$0xff]
    %v544 = vld [vmem:[#allocation6 + $0x198] sm:$0xff]
    %v545 = vld [vmem:[#allocation6 + $0x1a0] sm:$0xff]
    %v546 = vld [vmem:[#allocation6 + $0x1a8] sm:$0xff]
    %v547 = vld [vmem:[#allocation6 + $0x1b0] sm:$0xff]
    %v548 = vld [vmem:[#allocation6 + $0x1b8] sm:$0xff]
    %v549 = vld [vmem:[#allocation6 + $0x1c0] sm:$0xff]
    %v550 = vld [vmem:[#allocation6 + $0x1c8] sm:$0xff]
    %v551 = vld [vmem:[#allocation6 + $0x1d0] sm:$0xff]
    %v552 = vld [vmem:[#allocation6 + $0x1d8] sm:$0xff]
    %v553 = vld [vmem:[#allocation6 + $0x1e0] sm:$0xff]
    %v554 = vld [vmem:[#allocation6 + $0x1e8] sm:$0xff]
    %v555 = vld [vmem:[#allocation6 + $0x1f0] sm:$0xff]
    %v556 = vld [vmem:[#allocation6 + $0x1f8] sm:$0xff]
    %v557 = vld [vmem:[#allocation7] sm:$0x3]
    %v559 = vperm.slane %v557, 0
    %v560 = vperm.slane %v557, 1
    %563 = vmatpush.msra.mxu0 %v523
    %564 = vmatpush.msra.mxu0 %v521
    %565 = vmatpush.msra.mxu0 %v519
    %566 = vmatpush.msra.mxu0 %v517
    %567 = vmatpush.msra.mxu0 %v515
    %568 = vmatpush.msra.mxu0 %v513
    %569 = vmatpush.msra.mxu0 %v511
    %570 = vmatpush.msra.mxu0 %v509
    %571 = vmatpush.msra.mxu0 %v507
    %572 = vmatpush.msra.mxu0 %v505
    %573 = vmatpush.msra.mxu0 %v503
    %574 = vmatpush.msra.mxu0 %v501
    %575 = vmatpush.msra.mxu0 %v499
    %576 = vmatpush.msra.mxu0 %v497
    %577 = vmatpush.msra.mxu0 %v495
    %578 = vmatpush.msra.mxu0 %v493
    %579 = vmatmul.f32.gmra.mxu0 %v339
    %v580 = vpop.f32.mrf.mxu0
    %v581 = vadd.f32 %v559, %v580
    %582 = vdwg.mxu0
    %583 = vmatpush.msra.mxu0 %v555
    %584 = vmatpush.msra.mxu0 %v553
    %585 = vmatpush.msra.mxu0 %v551
    %586 = vmatpush.msra.mxu0 %v549
    %587 = vmatpush.msra.mxu0 %v547
    %588 = vmatpush.msra.mxu0 %v545
    %589 = vmatpush.msra.mxu0 %v543
    %590 = vmatpush.msra.mxu0 %v541
    %591 = vmatpush.msra.mxu0 %v539
    %592 = vmatpush.msra.mxu0 %v537
    %593 = vmatpush.msra.mxu0 %v535
    %594 = vmatpush.msra.mxu0 %v533
    %595 = vmatpush.msra.mxu0 %v531
    %596 = vmatpush.msra.mxu0 %v529
    %597 = vmatpush.msra.mxu0 %v527
    %598 = vmatpush.msra.mxu0 %v525
    %599 = vmatmul.f32.gmra.mxu0 %v340
    %v600 = vpop.f32.mrf.mxu0
    %v601 = vadd.f32 %v581, %v600
    %602 = vdwg.mxu0
    %603 = vmatpush.msra.mxu0 %v524
    %604 = vmatpush.msra.mxu0 %v522
    %605 = vmatpush.msra.mxu0 %v520
    %606 = vmatpush.msra.mxu0 %v518
    %607 = vmatpush.msra.mxu0 %v516
    %608 = vmatpush.msra.mxu0 %v514
    %609 = vmatpush.msra.mxu0 %v512
    %610 = vmatpush.msra.mxu0 %v510
    %611 = vmatpush.msra.mxu0 %v508
    %612 = vmatpush.msra.mxu0 %v506
    %613 = vmatpush.msra.mxu0 %v504
    %614 = vmatpush.msra.mxu0 %v502
    %615 = vmatpush.msra.mxu0 %v500
    %616 = vmatpush.msra.mxu0 %v498
    %617 = vmatpush.msra.mxu0 %v496
    %618 = vmatpush.msra.mxu0 %v494
    %619 = vmatmul.f32.gmra.mxu0 %v339
    %v620 = vpop.f32.mrf.mxu0
    %v621 = vadd.f32 %v560, %v620
    %622 = vdwg.mxu0
    %623 = vmatpush.msra.mxu0 %v556
    %624 = vmatpush.msra.mxu0 %v554
    %625 = vmatpush.msra.mxu0 %v552
    %626 = vmatpush.msra.mxu0 %v550
    %627 = vmatpush.msra.mxu0 %v548
    %628 = vmatpush.msra.mxu0 %v546
    %629 = vmatpush.msra.mxu0 %v544
    %630 = vmatpush.msra.mxu0 %v542
    %631 = vmatpush.msra.mxu0 %v540
    %632 = vmatpush.msra.mxu0 %v538
    %633 = vmatpush.msra.mxu0 %v536
    %634 = vmatpush.msra.mxu0 %v534
    %635 = vmatpush.msra.mxu0 %v532
    %636 = vmatpush.msra.mxu0 %v530
    %637 = vmatpush.msra.mxu0 %v528
    %638 = vmatpush.msra.mxu0 %v526
    %639 = vmatmul.f32.gmra.mxu0 %v340
    %v640 = vpop.f32.mrf.mxu0
    %v641 = vadd.f32 %v621, %v640
    %642 = vdwg.mxu0
    %v643 = vmax.f32 %v601, 0.0
    %v644 = vmax.f32 %v641, 0.0
    %v645 = vld [vmem:[#allocation9] sm:$0x1]
    %v646 = vld [vmem:[%s9] sm:$0xff]
    %v647 = vld [vmem:[%s9 + $0x8] sm:$0xff]
    %v648 = vld [vmem:[%s9 + $0x10] sm:$0xff]
    %v649 = vld [vmem:[%s9 + $0x18] sm:$0xff]
    %v650 = vld [vmem:[%s9 + $0x20] sm:$0xff]
    %v651 = vld [vmem:[%s9 + $0x28] sm:$0xff]
    %v652 = vld [vmem:[%s9 + $0x30] sm:$0xff]
    %v653 = vld [vmem:[%s9 + $0x38] sm:$0xff]
    %v654 = vld [vmem:[%s9 + $0x40] sm:$0xff]
    %v655 = vld [vmem:[%s9 + $0x48] sm:$0xff]
    %v656 = vld [vmem:[%s9 + $0x50] sm:$0xff]
    %v657 = vld [vmem:[%s9 + $0x58] sm:$0xff]
    %v658 = vld [vmem:[%s9 + $0x60] sm:$0xff]
    %v659 = vld [vmem:[%s9 + $0x68] sm:$0xff]
    %v660 = vld [vmem:[%s9 + $0x70] sm:$0xff]
    %v661 = vld [vmem:[%s9 + $0x78] sm:$0xff]
    %v662 = vld [vmem:[%s9 + $0x80] sm:$0xff]
    %v663 = vld [vmem:[%s9 + $0x88] sm:$0xff]
    %v664 = vld [vmem:[%s9 + $0x90] sm:$0xff]
    %v665 = vld [vmem:[%s9 + $0x98] sm:$0xff]
    %v666 = vld [vmem:[%s9 + $0xa0] sm:$0xff]
    %v667 = vld [vmem:[%s9 + $0xa8] sm:$0xff]
    %v668 = vld [vmem:[%s9 + $0xb0] sm:$0xff]
    %v669 = vld [vmem:[%s9 + $0xb8] sm:$0xff]
    %v670 = vld [vmem:[%s9 + $0xc0] sm:$0xff]
    %v671 = vld [vmem:[%s9 + $0xc8] sm:$0xff]
    %v672 = vld [vmem:[%s9 + $0xd0] sm:$0xff]
    %v673 = vld [vmem:[%s9 + $0xd8] sm:$0xff]
    %v674 = vld [vmem:[%s9 + $0xe0] sm:$0xff]
    %v675 = vld [vmem:[%s9 + $0xe8] sm:$0xff]
    %v676 = vld [vmem:[%s9 + $0xf0] sm:$0xff]
    %v677 = vld [vmem:[%s9 + $0xf8] sm:$0xff]
    %v678 = vld [vmem:[%s10] sm:$0xff]
    %v679 = vld [vmem:[%s10 + $0x8] sm:$0xff]
    %v680 = vld [vmem:[%s10 + $0x10] sm:$0xff]
    %v681 = vld [vmem:[%s10 + $0x18] sm:$0xff]
    %v682 = vld [vmem:[%s10 + $0x20] sm:$0xff]
    %v683 = vld [vmem:[%s10 + $0x28] sm:$0xff]
    %v684 = vld [vmem:[%s10 + $0x30] sm:$0xff]
    %v685 = vld [vmem:[%s10 + $0x38] sm:$0xff]
    %v686 = vld [vmem:[%s10 + $0x40] sm:$0xff]
    %v687 = vld [vmem:[%s10 + $0x48] sm:$0xff]
    %v688 = vld [vmem:[%s10 + $0x50] sm:$0xff]
    %v689 = vld [vmem:[%s10 + $0x58] sm:$0xff]
    %v690 = vld [vmem:[%s10 + $0x60] sm:$0xff]
    %v691 = vld [vmem:[%s10 + $0x68] sm:$0xff]
    %v692 = vld [vmem:[%s10 + $0x70] sm:$0xff]
    %v693 = vld [vmem:[%s10 + $0x78] sm:$0xff]
    %v694 = vld [vmem:[%s10 + $0x80] sm:$0xff]
    %v695 = vld [vmem:[%s10 + $0x88] sm:$0xff]
    %v696 = vld [vmem:[%s10 + $0x90] sm:$0xff]
    %v697 = vld [vmem:[%s10 + $0x98] sm:$0xff]
    %v698 = vld [vmem:[%s10 + $0xa0] sm:$0xff]
    %v699 = vld [vmem:[%s10 + $0xa8] sm:$0xff]
    %v700 = vld [vmem:[%s10 + $0xb0] sm:$0xff]
    %v701 = vld [vmem:[%s10 + $0xb8] sm:$0xff]
    %v702 = vld [vmem:[%s10 + $0xc0] sm:$0xff]
    %v703 = vld [vmem:[%s10 + $0xc8] sm:$0xff]
    %v704 = vld [vmem:[%s10 + $0xd0] sm:$0xff]
    %v705 = vld [vmem:[%s10 + $0xd8] sm:$0xff]
    %v706 = vld [vmem:[%s10 + $0xe0] sm:$0xff]
    %v707 = vld [vmem:[%s10 + $0xe8] sm:$0xff]
    %v708 = vld [vmem:[%s10 + $0xf0] sm:$0xff]
    %v709 = vld [vmem:[%s10 + $0xf8] sm:$0xff]
    %v711 = vperm.slane %v645, 0
    %713 = vmatpush.msra.mxu0 %v661
    %714 = vmatpush.msra.mxu0 %v660
    %715 = vmatpush.msra.mxu0 %v659
    %716 = vmatpush.msra.mxu0 %v658
    %717 = vmatpush.msra.mxu0 %v657
    %718 = vmatpush.msra.mxu0 %v656
    %719 = vmatpush.msra.mxu0 %v655
    %720 = vmatpush.msra.mxu0 %v654
    %721 = vmatpush.msra.mxu0 %v653
    %722 = vmatpush.msra.mxu0 %v652
    %723 = vmatpush.msra.mxu0 %v651
    %724 = vmatpush.msra.mxu0 %v650
    %725 = vmatpush.msra.mxu0 %v649
    %726 = vmatpush.msra.mxu0 %v648
    %727 = vmatpush.msra.mxu0 %v647
    %728 = vmatpush.msra.mxu0 %v646
    %729 = vmatmul.f32.gmra.mxu0 %v491
    %v730 = vpop.f32.mrf.mxu0
    %v731 = vadd.f32 %v711, %v730
    %732 = vdwg.mxu0
    %733 = vmatpush.msra.mxu0 %v677
    %734 = vmatpush.msra.mxu0 %v676
    %735 = vmatpush.msra.mxu0 %v675
    %736 = vmatpush.msra.mxu0 %v674
    %737 = vmatpush.msra.mxu0 %v673
    %738 = vmatpush.msra.mxu0 %v672
    %739 = vmatpush.msra.mxu0 %v671
    %740 = vmatpush.msra.mxu0 %v670
    %741 = vmatpush.msra.mxu0 %v669
    %742 = vmatpush.msra.mxu0 %v668
    %743 = vmatpush.msra.mxu0 %v667
    %744 = vmatpush.msra.mxu0 %v666
    %745 = vmatpush.msra.mxu0 %v665
    %746 = vmatpush.msra.mxu0 %v664
    %747 = vmatpush.msra.mxu0 %v663
    %748 = vmatpush.msra.mxu0 %v662
    %749 = vmatmul.f32.gmra.mxu0 %v492
    %v750 = vpop.f32.mrf.mxu0
    %v751 = vadd.f32 %v731, %v750
    %752 = vdwg.mxu0
    %vm753 = vcmask 7168
    %754 = vst.msk [vmem:[%s12] sm:$0xff] %vm753, %v751
    %755 = vrot.lane.b32.xlu0 %v711, 127
    %v756 = vpop.permute.xlu0 %755
    %758 = vmatpush.msra.mxu0 %v693
    %759 = vmatpush.msra.mxu0 %v692
    %760 = vmatpush.msra.mxu0 %v691
    %761 = vmatpush.msra.mxu0 %v690
    %762 = vmatpush.msra.mxu0 %v689
    %763 = vmatpush.msra.mxu0 %v688
    %764 = vmatpush.msra.mxu0 %v687
    %765 = vmatpush.msra.mxu0 %v686
    %766 = vmatpush.msra.mxu0 %v685
    %767 = vmatpush.msra.mxu0 %v684
    %768 = vmatpush.msra.mxu0 %v683
    %769 = vmatpush.msra.mxu0 %v682
    %770 = vmatpush.msra.mxu0 %v681
    %771 = vmatpush.msra.mxu0 %v680
    %772 = vmatpush.msra.mxu0 %v679
    %773 = vmatpush.msra.mxu0 %v678
    %774 = vmatmul.f32.gmra.mxu0 %v643
    %v775 = vpop.f32.mrf.mxu0
    %v776 = vadd.f32 %v756, %v775
    %777 = vdwg.mxu0
    %778 = vmatpush.msra.mxu0 %v709
    %779 = vmatpush.msra.mxu0 %v708
    %780 = vmatpush.msra.mxu0 %v707
    %781 = vmatpush.msra.mxu0 %v706
    %782 = vmatpush.msra.mxu0 %v705
    %783 = vmatpush.msra.mxu0 %v704
    %784 = vmatpush.msra.mxu0 %v703
    %785 = vmatpush.msra.mxu0 %v702
    %786 = vmatpush.msra.mxu0 %v701
    %787 = vmatpush.msra.mxu0 %v700
    %788 = vmatpush.msra.mxu0 %v699
    %789 = vmatpush.msra.mxu0 %v698
    %790 = vmatpush.msra.mxu0 %v697
    %791 = vmatpush.msra.mxu0 %v696
    %792 = vmatpush.msra.mxu0 %v695
    %793 = vmatpush.msra.mxu0 %v694
    %794 = vmatmul.f32.gmra.mxu0 %v644
    %v795 = vpop.f32.mrf.mxu0
    %v796 = vadd.f32 %v776, %v795
    %797 = vdwg.mxu0
    %799 = vrot.lane.b32.xlu0 %v796, 1
    %v800 = vpop.permute.xlu0 %799
    %vm802 = vcmask 15368
    %803 = vst.msk [vmem:[%s12] sm:$0xff] %vm802, %v800
    // Predicated region
    $region70: #{critic_forward.1} parent=1 // pred_check
      _
    $region71: #{critic_forward.1} parent=1 // pred_check_branch
      %805 = sbr.rel (0) target = $region73
    $region72: #{critic_forward.1} parent=1 // pred_region
      _
    $region73: #{critic_forward.1} parent=1 // pred_fallthru
      _
    // Predicated region
    $region74: #{critic_forward.1} parent=1 // pred_check
      _
    $region75: #{critic_forward.1} parent=1 // pred_check_branch
      %807 = sbr.rel (0) target = $region77
    $region76: #{critic_forward.1} parent=1 // pred_region
      _
    $region77: #{critic_forward.1} parent=1 // pred_fallthru
      _
    %808 = vsyncpa [#allocation3], 1
    %809 = vsyncpa [#allocation5], 1
    %810 = vsyncpa [#allocation8], 1

</llo_original>
